<compile_context>
chip_gen: v5e
topology: v5e:2x2
jax: 0.10.0
libtpu: 0.0.40
codegen_flags: <defaults>
</compile_context>

<pallas_src>
import jax
import jax.numpy as jnp
from jax import lax
from jax.experimental import pallas as pl
from jax.experimental.pallas import tpu as pltpu


def _round_up(n, m):
    return ((n + m - 1) // m) * m


def _fused_matvec_kernel(x_ref, w_ref, b_ref, o_ref):
    """One batch tile of the folded Linear1HiddenLayer forward.

    x_ref : (TB, IN)   f32  streamed activations (cast to bf16 under the DMA)
    w_ref : (1, IN)    bf16 folded weight row  (w1 @ wo)^T
    b_ref : (1, 1)     f32  folded bias        (b1 @ wo + bo)
    o_ref : (1, 1, TB) f32  lane-dense output row for this tile
    """
    x = x_ref[...].astype(w_ref.dtype)
    # (1, IN) contracted with (TB, IN) over IN -> (1, TB): fills the MXU output
    # lanes (N = TB) and lets the store below be a full unmasked lane-dense vst.
    out_row = lax.dot_general(
        w_ref[...], x,
        dimension_numbers=(((1,), (1,)), ((), ())),
        preferred_element_type=jnp.float32)
    out_row = out_row + b_ref[...]                     # scalar bias, f32
    o_ref[...] = out_row.reshape(o_ref.shape).astype(o_ref.dtype)


def _default_batch_tile(B, in_features, itemsize):
    """Byte-targeted batch tile: ~4 MiB of x per (double-buffered) tile."""
    lane_in = max(128, _round_up(in_features, 128))    # lane padding for small IN
    target_bytes = 4 * 1024 * 1024                     # per buffer; 2x <= 8 MiB (v7x-safe)
    rows = target_bytes // (itemsize * lane_in)
    if rows >= 128:
        tb = (rows // 128) * 128
    else:
        tb = max(8, (rows // 8) * 8)
    if B > 256:
        # Keep >= 2 grid tiles so both v7x TensorCores get work (no-op on 1-TC chips).
        tb = min(tb, _round_up(pl.cdiv(B, 2), 128))
    # Never exceed the (8-row aligned) batch itself.
    tb = min(tb, _round_up(B, 8))
    return tb


def linear1_forward(x, params, *, batch_tile=None, compute_dtype=jnp.bfloat16):
    """Fused Linear1HiddenLayer forward: out = x @ (w1 @ wo) + (b1 @ wo + bo).

    x: (B, input_size) f32
    params: dict with w1 (in, H), b1 (1, H), wo (H, 1), bo (1, 1)
    """
    assert x.ndim == 2, x.shape
    B, in_features = x.shape
    w1, b1 = params["w1"], params["b1"]
    wo, bo = params["wo"], params["bo"]
    hidden = w1.shape[1]
    assert w1.shape == (in_features, hidden)
    assert b1.shape == (1, hidden)
    assert wo.shape == (hidden, 1)
    assert bo.shape == (1, 1)

    # Fold the two Linears in f32 (activation1 is None), cast the weight row once.
    w_eff = (w1.astype(jnp.float32) @ wo.astype(jnp.float32)).reshape(1, in_features)
    w_eff = w_eff.astype(compute_dtype)                                    # (1, IN)
    b_eff = (b1.astype(jnp.float32) @ wo.astype(jnp.float32)
             + bo.astype(jnp.float32)).reshape(1, 1)                       # (1, 1) f32

    if batch_tile is None:
        batch_tile = _default_batch_tile(B, in_features, x.dtype.itemsize)
    batch_tile = max(8, _round_up(batch_tile, 8))

    num_tiles = pl.cdiv(B, batch_tile)   # partial last block if TB doesn't divide B

    out3d = pl.pallas_call(
        _fused_matvec_kernel,
        out_shape=jax.ShapeDtypeStruct((num_tiles, 1, batch_tile), x.dtype),
        grid_spec=pltpu.PrefetchScalarGridSpec(
            num_scalar_prefetch=0,
            grid=(num_tiles,),
            in_specs=[
                pl.BlockSpec((batch_tile, in_features), lambda i: (i, 0)),  # streamed x
                pl.BlockSpec((1, in_features), lambda i: (0, 0)),           # w_eff row
                pl.BlockSpec((1, 1), lambda i: (0, 0)),                     # b_eff
            ],
            out_specs=pl.BlockSpec((1, 1, batch_tile), lambda i: (i, 0, 0)),
        ),
        compiler_params=pltpu.CompilerParams(
            # Batch tiles are independent -> shard across TensorCores on v7x.
            dimension_semantics=("parallel",),
            # Consistent with <= ~8 MiB of double-buffered x; safe on v5e/v6e/v7x.
            vmem_limit_bytes=32 * 1024 * 1024,
        ),
    )(x, w_eff, b_eff)

    # Lane-dense (tiles, 1, TB) slab back to (B, 1); padded rows are sliced off.
    return out3d.reshape(num_tiles * batch_tile, 1)[:B]


def init_params(key, input_size, hidden_sizes):
    """PyTorch-style uniform fan-in init for Linear1HiddenLayer."""
    hidden = hidden_sizes[0]
    k1, k2, k3, k4 = jax.random.split(key, 4)
    bound1 = 1.0 / (input_size ** 0.5)
    bound2 = 1.0 / (hidden ** 0.5)
    return {
        "w1": jax.random.uniform(k1, (input_size, hidden), jnp.float32, -bound1, bound1),
        "b1": jax.random.uniform(k2, (1, hidden), jnp.float32, -bound1, bound1),
        "wo": jax.random.uniform(k3, (hidden, 1), jnp.float32, -bound2, bound2),
        "bo": jax.random.uniform(k4, (1, 1), jnp.float32, -bound2, bound2),
    }


def linear1_reference(x, params):
    """Pure-JAX f32 reference matching the PyTorch forward pass."""
    h = x @ params["w1"] + params["b1"]     # input_to_hidden1
    # activation1 is None -> no nonlinearity.
    return h @ params["wo"] + params["bo"]  # hidden1_to_output


if __name__ == "__main__":
    input_size = 32
    hidden_sizes = [32]

    key = jax.random.PRNGKey(0)
    k_params, k_x, k_x2, k_x3 = jax.random.split(key, 4)
    params = init_params(k_params, input_size, hidden_sizes)

    # Small case: single exact tile (batch_tile == B == 8).
    x = jax.random.normal(k_x, (8, input_size), jnp.float32)
    out = jax.block_until_ready(linear1_forward(x, params))
    ref = linear1_reference(x, params)
    assert out.shape == (8, 1), out.shape
    err = float(jnp.max(jnp.abs(out - ref)))
    assert jnp.allclose(out, ref, atol=3e-2, rtol=3e-2), f"mismatch, max abs err {err}"

    # Multi-tile case: explicit 256-row tiles -> grid=(4,), pipelined + parallel.
    x2 = jax.random.normal(k_x2, (1024, input_size), jnp.float32)
    out2 = jax.block_until_ready(linear1_forward(x2, params, batch_tile=256))
    ref2 = linear1_reference(x2, params)
    assert out2.shape == (1024, 1), out2.shape
    err2 = float(jnp.max(jnp.abs(out2 - ref2)))
    assert jnp.allclose(out2, ref2, atol=3e-2, rtol=3e-2), f"mismatch, max abs err {err2}"

    # Uneven batch: default tile sizing, partial last block (no wrapper jnp.pad).
    x3 = jax.random.normal(k_x3, (1000, input_size), jnp.float32)
    out3 = jax.block_until_ready(linear1_forward(x3, params))
    ref3 = linear1_reference(x3, params)
    assert out3.shape == (1000, 1), out3.shape
    err3 = float(jnp.max(jnp.abs(out3 - ref3)))
    assert jnp.allclose(out3, ref3, atol=3e-2, rtol=3e-2), f"mismatch, max abs err {err3}"

    print("KERNEL_OK")
</pallas_src>

<mosaic_0001>
module attributes {stable_mosaic.version = 11 : i64} {
  func.func @_fused_matvec_kernel(%arg0: i32, %arg1: memref<8x32xf32, #tpu.memory_space<vmem>>, %arg2: memref<1x32xbf16, #tpu.memory_space<vmem>>, %arg3: memref<1x1xf32, #tpu.memory_space<vmem>>, %arg4: memref<1x1x8xf32, #tpu.memory_space<vmem>>) attributes {dimension_semantics = [#tpu.dimension_semantics<parallel>], iteration_bounds = array<i64: 1>, scalar_prefetch = 0 : i64, scratch_operands = 0 : i64, tpu.core_type = #tpu.core_type<tc>, window_params = [{transform_indices = @transform_0, window_bounds = array<i64: 8, 32>}, {pipeline_mode = #tpu.pipeline_mode<synchronous>, transform_indices = @transform_1, window_bounds = array<i64: 1, 32>}, {pipeline_mode = #tpu.pipeline_mode<synchronous>, transform_indices = @transform_2, window_bounds = array<i64: 1, 1>}, {transform_indices = @transform_3, window_bounds = array<i64: 1, 1, 8>}]} {
    %c0 = arith.constant 0 : index
    %c0_0 = arith.constant 0 : index
    %0 = vector.load %arg1[%c0, %c0_0] : memref<8x32xf32, #tpu.memory_space<vmem>>, vector<8x32xf32>
    %1 = arith.truncf %0 : vector<8x32xf32> to vector<8x32xbf16>
    %c0_1 = arith.constant 0 : index
    %c0_2 = arith.constant 0 : index
    %2 = vector.load %arg2[%c0_1, %c0_2] : memref<1x32xbf16, #tpu.memory_space<vmem>>, vector<1x32xbf16>
    %cst = arith.constant dense<0.000000e+00> : vector<1x8xf32>
    %3 = tpu.matmul %2, %1, %cst {dimension_numbers = #tpu.dot_dimension_numbers<[1], [1], [0], [0], [0, 0, 1, 0], [], []>} : vector<1x32xbf16>, vector<8x32xbf16>, vector<1x8xf32> -> vector<1x8xf32>
    %c0_3 = arith.constant 0 : index
    %c0_4 = arith.constant 0 : index
    %4 = vector.load %arg3[%c0_3, %c0_4] : memref<1x1xf32, #tpu.memory_space<vmem>>, vector<1x1xf32>
    %5 = vector.broadcast %4 : vector<1x1xf32> to vector<1x8xf32>
    %6 = arith.addf %3, %5 : vector<1x8xf32>
    %7 = vector.shape_cast %6 : vector<1x8xf32> to vector<1x1x8xf32>
    %c0_5 = arith.constant 0 : index
    %c0_6 = arith.constant 0 : index
    %c0_7 = arith.constant 0 : index
    %8 = vector.load %arg4[%c0_5, %c0_6, %c0_7] : memref<1x1x8xf32, #tpu.memory_space<vmem>>, vector<1x1x8xf32>
    tpu.vector_store %arg4[%c0_5, %c0_6, %c0_7], %7 {strides = array<i32>} : memref<1x1x8xf32, #tpu.memory_space<vmem>>, vector<1x1x8xf32>,
    return
  }
  func.func @transform_0(%arg0: i32) -> (i32, i32) {
    %c0_i32 = arith.constant 0 : i32
    %c0_i32_0 = arith.constant 0 : i32
    return %arg0, %c0_i32 : i32, i32
  }
  func.func @transform_1(%arg0: i32) -> (i32, i32) {
    %c0_i32 = arith.constant 0 : i32
    %c0_i32_0 = arith.constant 0 : i32
    %c0_i32_1 = arith.constant 0 : i32
    return %c0_i32, %c0_i32_0 : i32, i32
  }
  func.func @transform_2(%arg0: i32) -> (i32, i32) {
    %c0_i32 = arith.constant 0 : i32
    %c0_i32_0 = arith.constant 0 : i32
    %c0_i32_1 = arith.constant 0 : i32
    return %c0_i32, %c0_i32_0 : i32, i32
  }
  func.func @transform_3(%arg0: i32) -> (i32, i32, i32) {
    %c0_i32 = arith.constant 0 : i32
    %c0_i32_0 = arith.constant 0 : i32
    %c0_i32_1 = arith.constant 0 : i32
    return %arg0, %c0_i32, %c0_i32_0 : i32, i32, i32
  }
}

</mosaic_0001>

<llo_original>
// kernel: tpu_custom_call.1
$region0: #{tpu_custom_call.1}
  #allocation0 [shape = 'u32[]', space=smem, size = 0x4, offset = 0x4, fixed_abs, tag = 'smem constant byte address 0x4 - core index']
  #allocation1 [shape = 'u32[72,128]{1,0:T(1,128)}', space=vmem, size = 0x9000, scoped, tag = 'internal scratch']
  #allocation2 [shape = 'f32[1,1]{1,0:T(1,128)S(1)}', space=vmem, size = 0x200, scoped, tag = 'scoped memory for tpu_custom_call.1']
  %s0 = inlined_call_operand.hbm [shape: f32[8,32], index: 0, kind: input, shape index: {}]
  %s1 = inlined_call_operand.vmem [shape: bf16[1,32], index: 1, kind: input, shape index: {}]
  %s2 = inlined_call_operand.<no memory space> [shape: f32[1,1], index: 2, kind: input, shape index: {}]
  %s3 = inlined_call_operand.hbm [shape: f32[1,1,8], index: 3, kind: output, shape index: {}]
  %s4 = sld [smem:[#allocation0]]
  $region26: #{tpu_custom_call.1} parent=0
    _
  %s6 = ssub.s32 1, %s4
  %s7 = scalar_select 0, %s6, %s4
  %v8 = vstv %s2
  %9 = vst [vmem:[#allocation2] sm:$0x1] %v8
  $region1: #{tpu_custom_call.1} parent=0
    #allocation3 [shape = 'u8[4096]{0}', space=vmem, size = 0x1000, scoped, tag = 'input window, operand 0, single buffered']
    #allocation4 [shape = 's32[1]{0}', space=sflag, size = 0x4, scoped, tag = 'scoped memory for tpu_custom_call.1']
    #allocation5 [shape = 's32[1]{0}', space=sflag, size = 0x4, scoped, tag = 'scoped memory for tpu_custom_call.1']
    #allocation6 [shape = 'u8[512]{0}', space=vmem, size = 0x400, scoped, tag = 'output window, operand 0, single buffered']
    %10 = vsyncpa [#allocation4], 0
    %11 = vsyncpa [#allocation5], 0
    // Predicated region
    $region2: #{tpu_custom_call.1} parent=1 // pred_check
      _
    $region3: #{tpu_custom_call.1} parent=1 // pred_check_branch
      %13 = sbr.rel (0) target = $region5
    $region4: #{tpu_custom_call.1} parent=1 // pred_region
      %15 = vsyncadd [#allocation4], 0
      %s17 = sshll.u32 %s0, 4
      %s18 = int_to_ptr.hbm [resolvable:$true] %s17
      %s19 = sshll.u32 [#allocation3], 4
      %s20 = int_to_ptr.vmem [resolvable:$true] %s19
      %22 = dma.hbm_to_vmem [thread:$0]  %s18, 128, %s20, [#allocation4]
    $region5: #{tpu_custom_call.1} parent=1 // pred_fallthru
      _
    // Predicated region
    $region6: #{tpu_custom_call.1} parent=1 // pred_check
      _
    $region7: #{tpu_custom_call.1} parent=1 // pred_check_branch
      %24 = sbr.rel (0) target = $region9
    $region8: #{tpu_custom_call.1} parent=1 // pred_region
      _
    $region9: #{tpu_custom_call.1} parent=1 // pred_fallthru
      _
    // Predicated region
    $region10: #{tpu_custom_call.1} parent=1 // pred_check
      _
    $region11: #{tpu_custom_call.1} parent=1 // pred_check_branch
      %26 = sbr.rel (0) target = $region13
    $region12: #{tpu_custom_call.1} parent=1 // pred_region
      _
    $region13: #{tpu_custom_call.1} parent=1 // pred_fallthru
      _
    // Predicated region
    $region14: #{tpu_custom_call.1} parent=1 // pred_check
      _
    $region15: #{tpu_custom_call.1} parent=1 // pred_check_branch
      %28 = sbr.rel (0) target = $region17
    $region16: #{tpu_custom_call.1} parent=1 // pred_region
      %30 = dma.done [#allocation4], 128
    $region17: #{tpu_custom_call.1} parent=1 // pred_fallthru
      _
    %v32 = vld [vmem:[#allocation3] sm:$0xff]
    %v33 = vpack.c.bf16 %v32, %v32
    %v34 = vld [vmem:[%s1] sm:$0x1]
    %v35 = vld [vmem:[#allocation2] sm:$0x1]
    %37 = vset.pattern.permute.xlu0 0
    %38 = vperm.xlu0 %37, %v35
    %v39 = vpop.permute.xlu0 %38
    %v41 = vperm.slane %v39, 0
    %vm42 = vcmask 261120
    %v44 = vsel %vm42, %v34, 0
    %v47 = vsel %vm42, %v33, 0
    %49 = vmatpush.bf16.xpose.msra.mxu0 0
    %50 = vmatpush.bf16.xpose.msra.mxu0 0
    %51 = vmatpush.bf16.xpose.msra.mxu0 0
    %52 = vmatpush.bf16.xpose.msra.mxu0 0
    %53 = vmatpush.bf16.xpose.msra.mxu0 0
    %54 = vmatpush.bf16.xpose.msra.mxu0 0
    %55 = vmatpush.bf16.xpose.msra.mxu0 0
    %56 = vmatpush.bf16.xpose.msra.mxu0 %v47
    %57 = vmatmul.bf16.gmra.mxu0 %v44
    %v58 = vpop.f32.mrf.mxu0
    %v59 = vadd.f32 %v41, %v58
    %v60 = vpop.f32.mrf.mxu0
    %61 = vdwg.mxu0
    %vm62 = vcmask 57344
    %63 = vst.msk [vmem:[#allocation6] sm:$0x1] %vm62, %v59
    // Predicated region
    $region18: #{tpu_custom_call.1} parent=1 // pred_check
      _
    $region19: #{tpu_custom_call.1} parent=1 // pred_check_branch
      %65 = sbr.rel (0) target = $region21
    $region20: #{tpu_custom_call.1} parent=1 // pred_region
      %67 = vsyncadd [#allocation5], 0
      %s69 = sshll.u32 [#allocation6], 4
      %s70 = int_to_ptr.vmem [resolvable:$true] %s69
      %s71 = sshll.u32 %s3, 4
      %s72 = int_to_ptr.hbm [resolvable:$true] %s71
      %74 = dma.vmem_to_hbm [thread:$0]  %s70, 16, %s72, [#allocation5]
    $region21: #{tpu_custom_call.1} parent=1 // pred_fallthru
      _
    // Predicated region
    $region22: #{tpu_custom_call.1} parent=1 // pred_check
      _
    $region23: #{tpu_custom_call.1} parent=1 // pred_check_branch
      %76 = sbr.rel (0) target = $region25
    $region24: #{tpu_custom_call.1} parent=1 // pred_region
      %78 = dma.done [#allocation5], 16
    $region25: #{tpu_custom_call.1} parent=1 // pred_fallthru
      _
    %79 = vsyncpa [#allocation4], 1
    %80 = vsyncpa [#allocation5], 1

</llo_original>
